<compile_context>
chip_gen: v5e
topology: v5e:2x2
jax: 0.10.0
libtpu: 0.0.40
codegen_flags: <defaults>
</compile_context>

<pallas_src>
import jax
import jax.numpy as jnp
from jax.experimental import pallas as pl
from jax.experimental.pallas import tpu as pltpu


# ------------------------------- kernel -------------------------------------


def _irl_kernel(x_ref, task_ref,
                w1big_ref, b1big_ref,
                w1a_ref, w1b_ref, b1m_ref,
                w2m_ref, b2m_ref,
                out_ref):
    # features: ReLU(x2 @ block_diag(w1) + tiled b1) -> (TB, obs*hidden), flat.
    feat = jnp.maximum(
        jnp.dot(x_ref[...], w1big_ref[...], preferred_element_type=jnp.float32)
        + b1big_ref[...], 0.0)

    # merged psi/phi hidden layer: concat folded into two matmuls (feature rows
    # / task rows), psi|phi stacked along the output lanes.
    h = jnp.maximum(
        jnp.dot(feat, w1a_ref[...], preferred_element_type=jnp.float32)
        + jnp.dot(task_ref[...], w1b_ref[...], preferred_element_type=jnp.float32)
        + b1m_ref[...], 0.0)

    # block-diagonal second layer (cumulant weights folded in) -> [q | rewards].
    out_ref[...] = (
        jnp.dot(h, w2m_ref[...], preferred_element_type=jnp.float32)
        + b2m_ref[...])


# ------------------------- parameter folding (once) --------------------------


def fold_irl_params(params, *, n_actions, num_cumulants):
    """Precompute derived kernel operands (call once per parameter set)."""
    O, H = params["w1"].shape
    A, C = n_actions, num_cumulants
    w = params["w"]

    # feature Linear as one lane-dense matmul on the flattened (B, O*O) input.
    w1big = jnp.kron(jnp.eye(O, dtype=jnp.float32), params["w1"])  # (O*O, O*H)
    b1big = jnp.tile(params["b1"], (1, O))                          # (1, O*H)

    def fold_second(w2_, b2_):
        w2f = (w2_.reshape(H, C, A) * w[None, :, None]).sum(axis=1)  # (H, A)
        b2f = (b2_.reshape(1, C, A) * w[None, :, None]).sum(axis=1)  # (1, A)
        return w2f, b2f

    wq2, bq2 = fold_second(params["wp2"], params["bp2"])
    wr2, br2 = fold_second(params["wf2"], params["bf2"])

    # merged psi|phi first layer, split into feature-row and task-row blocks.
    w1a = jnp.concatenate([params["wp1"][:O * H], params["wf1"][:O * H]], axis=1)  # (O*H, 2H)
    w1b = jnp.concatenate([params["wp1"][O * H:], params["wf1"][O * H:]], axis=1)  # (T, 2H)
    b1m = jnp.concatenate([params["bp1"], params["bf1"]], axis=1)                  # (1, 2H)

    # block-diagonal merged second layer -> writes [q | rewards] directly.
    z = jnp.zeros((H, A), jnp.float32)
    w2m = jnp.concatenate(
        [jnp.concatenate([wq2, z], axis=1),
         jnp.concatenate([z, wr2], axis=1)], axis=0)                               # (2H, 2A)
    b2m = jnp.concatenate([bq2, br2], axis=1)                                      # (1, 2A)

    return dict(w1big=w1big, b1big=b1big,
                w1a=w1a, w1b=w1b, b1m=b1m, w2m=w2m, b2m=b2m)


# ------------------------------- wrappers ------------------------------------


def _round_up(x, m):
    return ((x + m - 1) // m) * m


def _choose_batch_tile(B, batch_tile):
    """Pick a batch tile: single step for small B, >=2 steps (megacore) for
    large B, capped at batch_tile (multiple of 8)."""
    if B <= 512:
        return B if B <= batch_tile else batch_tile
    return min(batch_tile, _round_up(-(-B // 2), 8))


def irl_forward_folded(folded, x, task_encoding, *, batch_tile=1024):
    x = jnp.asarray(x, jnp.float32)
    task_encoding = jnp.asarray(task_encoding, jnp.float32)
    if x.ndim == 2:  # same unsqueeze behavior as the torch forward
        x = x[None]
        task_encoding = task_encoding[None]

    B, O, _ = x.shape
    A2 = folded["w2m"].shape[1]          # 2 * n_actions
    A = A2 // 2
    T = folded["w1b"].shape[0]

    x2 = x.reshape(B, O * O)  # free row-major flatten (done in the wrapper)

    TB = _choose_batch_tile(B, batch_tile)
    grid = (pl.cdiv(B, TB),)  # ragged last block handled by Pallas (OOB writes masked)

    def row_spec(cols):
        return pl.BlockSpec((TB, cols), lambda i: (i, 0))

    def const_spec(arr):
        return pl.BlockSpec(arr.shape, lambda i: (0, 0))

    weights = (folded["w1big"], folded["b1big"],
               folded["w1a"], folded["w1b"], folded["b1m"],
               folded["w2m"], folded["b2m"])

    out = pl.pallas_call(
        _irl_kernel,
        out_shape=jax.ShapeDtypeStruct((B, A2), jnp.float32),
        grid=grid,
        in_specs=[row_spec(O * O), row_spec(T)] + [const_spec(w) for w in weights],
        out_specs=row_spec(A2),
        compiler_params=pltpu.CompilerParams(
            dimension_semantics=("parallel",)),
    )(x2, task_encoding, *weights)

    q = out[:, :A]
    rewards = out[:, A:]
    return q, rewards


def irl_forward(params, x, task_encoding, *, n_actions, num_cumulants, folded=None):
    """Mirrors IRL.forward: returns (q, rewards), both (B, n_actions)."""
    if folded is None:
        folded = fold_irl_params(params, n_actions=n_actions,
                                 num_cumulants=num_cumulants)
    return irl_forward_folded(folded, x, task_encoding)


# --------------------------- deterministic init ------------------------------


def init_irl_params(key, obs_shape, n_actions, num_cumulants, num_tasks, hidden):
    F = obs_shape * hidden + num_tasks
    CA = num_cumulants * n_actions
    ks = jax.random.split(key, 9)

    def lin(kw, fan_in, fan_out):
        lim = 1.0 / jnp.sqrt(jnp.asarray(fan_in, jnp.float32))
        w = jax.random.uniform(kw, (fan_in, fan_out), jnp.float32, -lim, lim)
        b = jax.random.uniform(jax.random.fold_in(kw, 1), (1, fan_out),
                               jnp.float32, -lim, lim)
        return w, b

    w1, b1 = lin(ks[0], obs_shape, hidden)
    wp1, bp1 = lin(ks[1], F, hidden)
    wp2, bp2 = lin(ks[2], hidden, CA)
    wf1, bf1 = lin(ks[3], F, hidden)
    wf2, bf2 = lin(ks[4], hidden, CA)
    w = jax.random.normal(ks[5], (num_cumulants,), jnp.float32)
    return dict(w1=w1, b1=b1, wp1=wp1, bp1=bp1, wp2=wp2, bp2=bp2,
                wf1=wf1, bf1=bf1, wf2=wf2, bf2=bf2, w=w)


# --------------------------- pure-JAX reference -------------------------------


def irl_reference(params, x, task_encoding, *, n_actions, num_cumulants):
    B, O, _ = x.shape
    H = params["w1"].shape[1]
    f = jnp.maximum(x @ params["w1"] + params["b1"][0], 0.0).reshape(B, O * H)
    f = jnp.concatenate([f, task_encoding], axis=-1)
    h_psi = jnp.maximum(f @ params["wp1"] + params["bp1"][0], 0.0)
    o_psi = (h_psi @ params["wp2"] + params["bp2"][0]).reshape(B, num_cumulants, n_actions)
    q = jnp.einsum("bca,c->ba", o_psi, params["w"])
    h_phi = jnp.maximum(f @ params["wf1"] + params["bf1"][0], 0.0)
    o_phi = (h_phi @ params["wf2"] + params["bf2"][0]).reshape(B, num_cumulants, n_actions)
    r = jnp.einsum("bca,c->ba", o_phi, params["w"])
    return q, r


if __name__ == "__main__":
    # Small shapes implied by the forward: x is (B, obs, obs)
    B, OBS, N_ACTIONS, CUMULANTS, TASKS, HIDDEN = 2, 16, 4, 8, 4, 32

    key = jax.random.PRNGKey(0)
    k_p, k_x, k_t = jax.random.split(key, 3)

    params = init_irl_params(k_p, OBS, N_ACTIONS, CUMULANTS, TASKS, HIDDEN)
    folded = fold_irl_params(params, n_actions=N_ACTIONS, num_cumulants=CUMULANTS)

    x = jax.random.normal(k_x, (B, OBS, OBS), jnp.float32)
    task_encoding = jax.nn.one_hot(
        jax.random.randint(k_t, (B,), 0, TASKS), TASKS, dtype=jnp.float32)

    q, rewards = irl_forward(params, x, task_encoding,
                             n_actions=N_ACTIONS, num_cumulants=CUMULANTS,
                             folded=folded)
    jax.block_until_ready((q, rewards))

    q_ref, r_ref = irl_reference(params, x, task_encoding,
                                 n_actions=N_ACTIONS, num_cumulants=CUMULANTS)
    assert q.shape == (B, N_ACTIONS) and rewards.shape == (B, N_ACTIONS)
    assert jnp.allclose(q, q_ref, atol=1e-3, rtol=1e-3)
    assert jnp.allclose(rewards, r_ref, atol=1e-3, rtol=1e-3)

    # Exercise the multi-step megacore path + ragged last block (no wrapper pad).
    B2 = 1300
    x2 = jax.random.normal(jax.random.fold_in(k_x, 7), (B2, OBS, OBS), jnp.float32)
    t2 = jax.nn.one_hot(
        jax.random.randint(jax.random.fold_in(k_t, 7), (B2,), 0, TASKS),
        TASKS, dtype=jnp.float32)
    q2, r2 = irl_forward(params, x2, t2, n_actions=N_ACTIONS,
                         num_cumulants=CUMULANTS, folded=folded)
    jax.block_until_ready((q2, r2))
    q2_ref, r2_ref = irl_reference(params, x2, t2, n_actions=N_ACTIONS,
                                   num_cumulants=CUMULANTS)
    assert q2.shape == (B2, N_ACTIONS) and r2.shape == (B2, N_ACTIONS)
    assert jnp.allclose(q2, q2_ref, atol=1e-3, rtol=1e-3)
    assert jnp.allclose(r2, r2_ref, atol=1e-3, rtol=1e-3)

    print("KERNEL_OK")
</pallas_src>

<mosaic_0001>
module attributes {stable_mosaic.version = 11 : i64} {
  func.func @_irl_kernel(%arg0: i32, %arg1: memref<2x256xf32, #tpu.memory_space<vmem>>, %arg2: memref<2x4xf32, #tpu.memory_space<vmem>>, %arg3: memref<256x512xf32, #tpu.memory_space<vmem>>, %arg4: memref<1x512xf32, #tpu.memory_space<vmem>>, %arg5: memref<512x64xf32, #tpu.memory_space<vmem>>, %arg6: memref<4x64xf32, #tpu.memory_space<vmem>>, %arg7: memref<1x64xf32, #tpu.memory_space<vmem>>, %arg8: memref<64x8xf32, #tpu.memory_space<vmem>>, %arg9: memref<1x8xf32, #tpu.memory_space<vmem>>, %arg10: memref<2x8xf32, #tpu.memory_space<vmem>>) attributes {dimension_semantics = [#tpu.dimension_semantics<parallel>], iteration_bounds = array<i64: 1>, scalar_prefetch = 0 : i64, scratch_operands = 0 : i64, tpu.core_type = #tpu.core_type<tc>, window_params = [{transform_indices = @transform_0, window_bounds = array<i64: 2, 256>}, {transform_indices = @transform_1, window_bounds = array<i64: 2, 4>}, {pipeline_mode = #tpu.pipeline_mode<synchronous>, transform_indices = @transform_2, window_bounds = array<i64: 256, 512>}, {pipeline_mode = #tpu.pipeline_mode<synchronous>, transform_indices = @transform_3, window_bounds = array<i64: 1, 512>}, {pipeline_mode = #tpu.pipeline_mode<synchronous>, transform_indices = @transform_4, window_bounds = array<i64: 512, 64>}, {pipeline_mode = #tpu.pipeline_mode<synchronous>, transform_indices = @transform_5, window_bounds = array<i64: 4, 64>}, {pipeline_mode = #tpu.pipeline_mode<synchronous>, transform_indices = @transform_6, window_bounds = array<i64: 1, 64>}, {pipeline_mode = #tpu.pipeline_mode<synchronous>, transform_indices = @transform_7, window_bounds = array<i64: 64, 8>}, {pipeline_mode = #tpu.pipeline_mode<synchronous>, transform_indices = @transform_8, window_bounds = array<i64: 1, 8>}, {transform_indices = @transform_9, window_bounds = array<i64: 2, 8>}]} {
    %c0 = arith.constant 0 : index
    %c0_0 = arith.constant 0 : index
    %0 = vector.load %arg1[%c0, %c0_0] : memref<2x256xf32, #tpu.memory_space<vmem>>, vector<2x256xf32>
    %c0_1 = arith.constant 0 : index
    %c0_2 = arith.constant 0 : index
    %1 = vector.load %arg3[%c0_1, %c0_2] : memref<256x512xf32, #tpu.memory_space<vmem>>, vector<256x512xf32>
    %cst = arith.constant dense<0.000000e+00> : vector<2x512xf32>
    %2 = tpu.matmul %0, %1, %cst {dimension_numbers = #tpu.dot_dimension_numbers<[1], [0], [0], [1], [0, 0, 1, 1], [], []>} : vector<2x256xf32>, vector<256x512xf32>, vector<2x512xf32> -> vector<2x512xf32>
    %c0_3 = arith.constant 0 : index
    %c0_4 = arith.constant 0 : index
    %3 = vector.load %arg4[%c0_3, %c0_4] : memref<1x512xf32, #tpu.memory_space<vmem>>, vector<1x512xf32>
    %4 = vector.broadcast %3 : vector<1x512xf32> to vector<2x512xf32>
    %5 = arith.addf %2, %4 : vector<2x512xf32>
    %cst_5 = arith.constant 0.000000e+00 : f32
    %6 = vector.broadcast %cst_5 : f32 to vector<2x512xf32>
    %7 = arith.maximumf %5, %6 : vector<2x512xf32>
    %c0_6 = arith.constant 0 : index
    %c0_7 = arith.constant 0 : index
    %8 = vector.load %arg5[%c0_6, %c0_7] : memref<512x64xf32, #tpu.memory_space<vmem>>, vector<512x64xf32>
    %cst_8 = arith.constant dense<0.000000e+00> : vector<2x64xf32>
    %9 = tpu.matmul %7, %8, %cst_8 {dimension_numbers = #tpu.dot_dimension_numbers<[1], [0], [0], [1], [0, 0, 1, 1], [], []>} : vector<2x512xf32>, vector<512x64xf32>, vector<2x64xf32> -> vector<2x64xf32>
    %c0_9 = arith.constant 0 : index
    %c0_10 = arith.constant 0 : index
    %10 = vector.load %arg2[%c0_9, %c0_10] : memref<2x4xf32, #tpu.memory_space<vmem>>, vector<2x4xf32>
    %c0_11 = arith.constant 0 : index
    %c0_12 = arith.constant 0 : index
    %11 = vector.load %arg6[%c0_11, %c0_12] : memref<4x64xf32, #tpu.memory_space<vmem>>, vector<4x64xf32>
    %cst_13 = arith.constant dense<0.000000e+00> : vector<2x64xf32>
    %12 = tpu.matmul %10, %11, %cst_13 {dimension_numbers = #tpu.dot_dimension_numbers<[1], [0], [0], [1], [0, 0, 1, 1], [], []>} : vector<2x4xf32>, vector<4x64xf32>, vector<2x64xf32> -> vector<2x64xf32>
    %13 = arith.addf %9, %12 : vector<2x64xf32>
    %c0_14 = arith.constant 0 : index
    %c0_15 = arith.constant 0 : index
    %14 = vector.load %arg7[%c0_14, %c0_15] : memref<1x64xf32, #tpu.memory_space<vmem>>, vector<1x64xf32>
    %15 = vector.broadcast %14 : vector<1x64xf32> to vector<2x64xf32>
    %16 = arith.addf %13, %15 : vector<2x64xf32>
    %cst_16 = arith.constant 0.000000e+00 : f32
    %17 = vector.broadcast %cst_16 : f32 to vector<2x64xf32>
    %18 = arith.maximumf %16, %17 : vector<2x64xf32>
    %c0_17 = arith.constant 0 : index
    %c0_18 = arith.constant 0 : index
    %19 = vector.load %arg8[%c0_17, %c0_18] : memref<64x8xf32, #tpu.memory_space<vmem>>, vector<64x8xf32>
    %cst_19 = arith.constant dense<0.000000e+00> : vector<2x8xf32>
    %20 = tpu.matmul %18, %19, %cst_19 {dimension_numbers = #tpu.dot_dimension_numbers<[1], [0], [0], [1], [0, 0, 1, 1], [], []>} : vector<2x64xf32>, vector<64x8xf32>, vector<2x8xf32> -> vector<2x8xf32>
    %c0_20 = arith.constant 0 : index
    %c0_21 = arith.constant 0 : index
    %21 = vector.load %arg9[%c0_20, %c0_21] : memref<1x8xf32, #tpu.memory_space<vmem>>, vector<1x8xf32>
    %22 = vector.broadcast %21 : vector<1x8xf32> to vector<2x8xf32>
    %23 = arith.addf %20, %22 : vector<2x8xf32>
    %c0_22 = arith.constant 0 : index
    %c0_23 = arith.constant 0 : index
    %24 = vector.load %arg10[%c0_22, %c0_23] : memref<2x8xf32, #tpu.memory_space<vmem>>, vector<2x8xf32>
    tpu.vector_store %arg10[%c0_22, %c0_23], %23 {strides = array<i32>} : memref<2x8xf32, #tpu.memory_space<vmem>>, vector<2x8xf32>,
    return
  }
  func.func @transform_0(%arg0: i32) -> (i32, i32) {
    %c0_i32 = arith.constant 0 : i32
    %c0_i32_0 = arith.constant 0 : i32
    return %arg0, %c0_i32 : i32, i32
  }
  func.func @transform_1(%arg0: i32) -> (i32, i32) {
    %c0_i32 = arith.constant 0 : i32
    %c0_i32_0 = arith.constant 0 : i32
    return %arg0, %c0_i32 : i32, i32
  }
  func.func @transform_2(%arg0: i32) -> (i32, i32) {
    %c0_i32 = arith.constant 0 : i32
    %c0_i32_0 = arith.constant 0 : i32
    %c0_i32_1 = arith.constant 0 : i32
    return %c0_i32, %c0_i32_0 : i32, i32
  }
  func.func @transform_3(%arg0: i32) -> (i32, i32) {
    %c0_i32 = arith.constant 0 : i32
    %c0_i32_0 = arith.constant 0 : i32
    %c0_i32_1 = arith.constant 0 : i32
    return %c0_i32, %c0_i32_0 : i32, i32
  }
  func.func @transform_4(%arg0: i32) -> (i32, i32) {
    %c0_i32 = arith.constant 0 : i32
    %c0_i32_0 = arith.constant 0 : i32
    %c0_i32_1 = arith.constant 0 : i32
    return %c0_i32, %c0_i32_0 : i32, i32
  }
  func.func @transform_5(%arg0: i32) -> (i32, i32) {
    %c0_i32 = arith.constant 0 : i32
    %c0_i32_0 = arith.constant 0 : i32
    %c0_i32_1 = arith.constant 0 : i32
    return %c0_i32, %c0_i32_0 : i32, i32
  }
  func.func @transform_6(%arg0: i32) -> (i32, i32) {
    %c0_i32 = arith.constant 0 : i32
    %c0_i32_0 = arith.constant 0 : i32
    %c0_i32_1 = arith.constant 0 : i32
    return %c0_i32, %c0_i32_0 : i32, i32
  }
  func.func @transform_7(%arg0: i32) -> (i32, i32) {
    %c0_i32 = arith.constant 0 : i32
    %c0_i32_0 = arith.constant 0 : i32
    %c0_i32_1 = arith.constant 0 : i32
    return %c0_i32, %c0_i32_0 : i32, i32
  }
  func.func @transform_8(%arg0: i32) -> (i32, i32) {
    %c0_i32 = arith.constant 0 : i32
    %c0_i32_0 = arith.constant 0 : i32
    %c0_i32_1 = arith.constant 0 : i32
    return %c0_i32, %c0_i32_0 : i32, i32
  }
  func.func @transform_9(%arg0: i32) -> (i32, i32) {
    %c0_i32 = arith.constant 0 : i32
    %c0_i32_0 = arith.constant 0 : i32
    return %arg0, %c0_i32 : i32, i32
  }
}

</mosaic_0001>

<llo_original>
// kernel: tpu_custom_call.1
$region0: #{tpu_custom_call.1}
  #allocation0 [shape = 'u32[]', space=smem, size = 0x4, offset = 0x4, fixed_abs, tag = 'smem constant byte address 0x4 - core index']
  #allocation1 [shape = 'u32[72,128]{1,0:T(1,128)}', space=vmem, size = 0x9000, scoped, tag = 'internal scratch']
  %s0 = inlined_call_operand.vmem [shape: f32[2,256], index: 0, kind: input, shape index: {}]
  %s1 = inlined_call_operand.vmem [shape: f32[2,4], index: 1, kind: input, shape index: {}]
  %s2 = inlined_call_operand.hbm [shape: f32[256,512], index: 2, kind: input, shape index: {}]
  %s3 = inlined_call_operand.vmem [shape: f32[1,512], index: 3, kind: input, shape index: {}]
  %s4 = inlined_call_operand.vmem [shape: f32[512,64], index: 4, kind: input, shape index: {}]
  %s5 = inlined_call_operand.vmem [shape: f32[4,64], index: 5, kind: input, shape index: {}]
  %s6 = inlined_call_operand.vmem [shape: f32[1,64], index: 6, kind: input, shape index: {}]
  %s7 = inlined_call_operand.vmem [shape: f32[64,8], index: 7, kind: input, shape index: {}]
  %s8 = inlined_call_operand.vmem [shape: f32[1,8], index: 8, kind: input, shape index: {}]
  %s9 = inlined_call_operand.hbm [shape: f32[2,8], index: 9, kind: output, shape index: {}]
  %s10 = sld [smem:[#allocation0]]
  $region50: #{tpu_custom_call.1} parent=0
    _
  %s12 = ssub.s32 1, %s10
  %s13 = scalar_select 0, %s12, %s10
  $region1: #{tpu_custom_call.1} parent=0
    #allocation2 [shape = 'u8[524288]{0}', space=vmem, size = 0x80000, scoped, tag = 'input window, operand 2, single buffered']
    #allocation3 [shape = 's32[1]{0}', space=sflag, size = 0x4, scoped, tag = 'scoped memory for tpu_custom_call.1']
    #allocation4 [shape = 's32[1]{0}', space=sflag, size = 0x4, scoped, tag = 'scoped memory for tpu_custom_call.1']
    #allocation5 [shape = 'u8[1024]{0}', space=vmem, size = 0x400, scoped, tag = 'output window, operand 0, single buffered']
    %14 = vsyncpa [#allocation3], 0
    %15 = vsyncpa [#allocation4], 0
    // Predicated region
    $region2: #{tpu_custom_call.1} parent=1 // pred_check
      _
    $region3: #{tpu_custom_call.1} parent=1 // pred_check_branch
      %17 = sbr.rel (0) target = $region5
    $region4: #{tpu_custom_call.1} parent=1 // pred_region
      _
    $region5: #{tpu_custom_call.1} parent=1 // pred_fallthru
      _
    // Predicated region
    $region6: #{tpu_custom_call.1} parent=1 // pred_check
      _
    $region7: #{tpu_custom_call.1} parent=1 // pred_check_branch
      %19 = sbr.rel (0) target = $region9
    $region8: #{tpu_custom_call.1} parent=1 // pred_region
      _
    $region9: #{tpu_custom_call.1} parent=1 // pred_fallthru
      _
    // Predicated region
    $region10: #{tpu_custom_call.1} parent=1 // pred_check
      _
    $region11: #{tpu_custom_call.1} parent=1 // pred_check_branch
      %21 = sbr.rel (0) target = $region13
    $region12: #{tpu_custom_call.1} parent=1 // pred_region
      %23 = vsyncadd [#allocation3], 0
      %s24 = sshll.u32 %s2, 4
      %s25 = int_to_ptr.hbm [resolvable:$true] %s24
      %s26 = sshll.u32 [#allocation2], 4
      %s27 = int_to_ptr.vmem [resolvable:$true] %s26
      %32 = dma.hbm_to_vmem [thread:$0]  %s25, 16384, %s27, [#allocation3], 512, 512, 32
    $region13: #{tpu_custom_call.1} parent=1 // pred_fallthru
      _
    // Predicated region
    $region14: #{tpu_custom_call.1} parent=1 // pred_check
      _
    $region15: #{tpu_custom_call.1} parent=1 // pred_check_branch
      %34 = sbr.rel (0) target = $region17
    $region16: #{tpu_custom_call.1} parent=1 // pred_region
      _
    $region17: #{tpu_custom_call.1} parent=1 // pred_fallthru
      _
    // Predicated region
    $region18: #{tpu_custom_call.1} parent=1 // pred_check
      _
    $region19: #{tpu_custom_call.1} parent=1 // pred_check_branch
      %36 = sbr.rel (0) target = $region21
    $region20: #{tpu_custom_call.1} parent=1 // pred_region
      _
    $region21: #{tpu_custom_call.1} parent=1 // pred_fallthru
      _
    // Predicated region
    $region22: #{tpu_custom_call.1} parent=1 // pred_check
      _
    $region23: #{tpu_custom_call.1} parent=1 // pred_check_branch
      %38 = sbr.rel (0) target = $region25
    $region24: #{tpu_custom_call.1} parent=1 // pred_region
      _
    $region25: #{tpu_custom_call.1} parent=1 // pred_fallthru
      _
    // Predicated region
    $region26: #{tpu_custom_call.1} parent=1 // pred_check
      _
    $region27: #{tpu_custom_call.1} parent=1 // pred_check_branch
      %40 = sbr.rel (0) target = $region29
    $region28: #{tpu_custom_call.1} parent=1 // pred_region
      _
    $region29: #{tpu_custom_call.1} parent=1 // pred_fallthru
      _
    // Predicated region
    $region30: #{tpu_custom_call.1} parent=1 // pred_check
      _
    $region31: #{tpu_custom_call.1} parent=1 // pred_check_branch
      %42 = sbr.rel (0) target = $region33
    $region32: #{tpu_custom_call.1} parent=1 // pred_region
      _
    $region33: #{tpu_custom_call.1} parent=1 // pred_fallthru
      _
    // Predicated region
    $region34: #{tpu_custom_call.1} parent=1 // pred_check
      _
    $region35: #{tpu_custom_call.1} parent=1 // pred_check_branch
      %44 = sbr.rel (0) target = $region37
    $region36: #{tpu_custom_call.1} parent=1 // pred_region
      _
    $region37: #{tpu_custom_call.1} parent=1 // pred_fallthru
      _
    // Predicated region
    $region38: #{tpu_custom_call.1} parent=1 // pred_check
      _
    $region39: #{tpu_custom_call.1} parent=1 // pred_check_branch
      %46 = sbr.rel (0) target = $region41
    $region40: #{tpu_custom_call.1} parent=1 // pred_region
      %48 = dma.done [#allocation3], 16384
    $region41: #{tpu_custom_call.1} parent=1 // pred_fallthru
      _
    %v49 = vld [vmem:[%s0] sm:$0xf]
    %v50 = vld [vmem:[#allocation2] sm:$0xff]
    %v51 = vld [vmem:[#allocation2 + $0x8] sm:$0xff]
    %v52 = vld [vmem:[#allocation2 + $0x10] sm:$0xff]
    %v53 = vld [vmem:[#allocation2 + $0x18] sm:$0xff]
    %v54 = vld [vmem:[#allocation2 + $0x20] sm:$0xff]
    %v55 = vld [vmem:[#allocation2 + $0x28] sm:$0xff]
    %v56 = vld [vmem:[#allocation2 + $0x30] sm:$0xff]
    %v57 = vld [vmem:[#allocation2 + $0x38] sm:$0xff]
    %v58 = vld [vmem:[#allocation2 + $0x40] sm:$0xff]
    %v59 = vld [vmem:[#allocation2 + $0x48] sm:$0xff]
    %v60 = vld [vmem:[#allocation2 + $0x50] sm:$0xff]
    %v61 = vld [vmem:[#allocation2 + $0x58] sm:$0xff]
    %v62 = vld [vmem:[#allocation2 + $0x60] sm:$0xff]
    %v63 = vld [vmem:[#allocation2 + $0x68] sm:$0xff]
    %v64 = vld [vmem:[#allocation2 + $0x70] sm:$0xff]
    %v65 = vld [vmem:[#allocation2 + $0x78] sm:$0xff]
    %v66 = vld [vmem:[#allocation2 + $0x80] sm:$0xff]
    %v67 = vld [vmem:[#allocation2 + $0x88] sm:$0xff]
    %v68 = vld [vmem:[#allocation2 + $0x90] sm:$0xff]
    %v69 = vld [vmem:[#allocation2 + $0x98] sm:$0xff]
    %v70 = vld [vmem:[#allocation2 + $0xa0] sm:$0xff]
    %v71 = vld [vmem:[#allocation2 + $0xa8] sm:$0xff]
    %v72 = vld [vmem:[#allocation2 + $0xb0] sm:$0xff]
    %v73 = vld [vmem:[#allocation2 + $0xb8] sm:$0xff]
    %v74 = vld [vmem:[#allocation2 + $0xc0] sm:$0xff]
    %v75 = vld [vmem:[#allocation2 + $0xc8] sm:$0xff]
    %v76 = vld [vmem:[#allocation2 + $0xd0] sm:$0xff]
    %v77 = vld [vmem:[#allocation2 + $0xd8] sm:$0xff]
    %v78 = vld [vmem:[#allocation2 + $0xe0] sm:$0xff]
    %v79 = vld [vmem:[#allocation2 + $0xe8] sm:$0xff]
    %v80 = vld [vmem:[#allocation2 + $0xf0] sm:$0xff]
    %v81 = vld [vmem:[#allocation2 + $0xf8] sm:$0xff]
    %v82 = vld [vmem:[#allocation2 + $0x100] sm:$0xff]
    %v83 = vld [vmem:[#allocation2 + $0x108] sm:$0xff]
    %v84 = vld [vmem:[#allocation2 + $0x110] sm:$0xff]
    %v85 = vld [vmem:[#allocation2 + $0x118] sm:$0xff]
    %v86 = vld [vmem:[#allocation2 + $0x120] sm:$0xff]
    %v87 = vld [vmem:[#allocation2 + $0x128] sm:$0xff]
    %v88 = vld [vmem:[#allocation2 + $0x130] sm:$0xff]
    %v89 = vld [vmem:[#allocation2 + $0x138] sm:$0xff]
    %v90 = vld [vmem:[#allocation2 + $0x140] sm:$0xff]
    %v91 = vld [vmem:[#allocation2 + $0x148] sm:$0xff]
    %v92 = vld [vmem:[#allocation2 + $0x150] sm:$0xff]
    %v93 = vld [vmem:[#allocation2 + $0x158] sm:$0xff]
    %v94 = vld [vmem:[#allocation2 + $0x160] sm:$0xff]
    %v95 = vld [vmem:[#allocation2 + $0x168] sm:$0xff]
    %v96 = vld [vmem:[#allocation2 + $0x170] sm:$0xff]
    %v97 = vld [vmem:[#allocation2 + $0x178] sm:$0xff]
    %v98 = vld [vmem:[#allocation2 + $0x180] sm:$0xff]
    %v99 = vld [vmem:[#allocation2 + $0x188] sm:$0xff]
    %v100 = vld [vmem:[#allocation2 + $0x190] sm:$0xff]
    %v101 = vld [vmem:[#allocation2 + $0x198] sm:$0xff]
    %v102 = vld [vmem:[#allocation2 + $0x1a0] sm:$0xff]
    %v103 = vld [vmem:[#allocation2 + $0x1a8] sm:$0xff]
    %v104 = vld [vmem:[#allocation2 + $0x1b0] sm:$0xff]
    %v105 = vld [vmem:[#allocation2 + $0x1b8] sm:$0xff]
    %v106 = vld [vmem:[#allocation2 + $0x1c0] sm:$0xff]
    %v107 = vld [vmem:[#allocation2 + $0x1c8] sm:$0xff]
    %v108 = vld [vmem:[#allocation2 + $0x1d0] sm:$0xff]
    %v109 = vld [vmem:[#allocation2 + $0x1d8] sm:$0xff]
    %v110 = vld [vmem:[#allocation2 + $0x1e0] sm:$0xff]
    %v111 = vld [vmem:[#allocation2 + $0x1e8] sm:$0xff]
    %v112 = vld [vmem:[#allocation2 + $0x1f0] sm:$0xff]
    %v113 = vld [vmem:[#allocation2 + $0x1f8] sm:$0xff]
    %v114 = vld [vmem:[#allocation2 + $0x200] sm:$0xff]
    %v115 = vld [vmem:[#allocation2 + $0x208] sm:$0xff]
    %v116 = vld [vmem:[#allocation2 + $0x210] sm:$0xff]
    %v117 = vld [vmem:[#allocation2 + $0x218] sm:$0xff]
    %v118 = vld [vmem:[#allocation2 + $0x220] sm:$0xff]
    %v119 = vld [vmem:[#allocation2 + $0x228] sm:$0xff]
    %v120 = vld [vmem:[#allocation2 + $0x230] sm:$0xff]
    %v121 = vld [vmem:[#allocation2 + $0x238] sm:$0xff]
    %v122 = vld [vmem:[#allocation2 + $0x240] sm:$0xff]
    %v123 = vld [vmem:[#allocation2 + $0x248] sm:$0xff]
    %v124 = vld [vmem:[#allocation2 + $0x250] sm:$0xff]
    %v125 = vld [vmem:[#allocation2 + $0x258] sm:$0xff]
    %v126 = vld [vmem:[#allocation2 + $0x260] sm:$0xff]
    %v127 = vld [vmem:[#allocation2 + $0x268] sm:$0xff]
    %v128 = vld [vmem:[#allocation2 + $0x270] sm:$0xff]
    %v129 = vld [vmem:[#allocation2 + $0x278] sm:$0xff]
    %v130 = vld [vmem:[#allocation2 + $0x280] sm:$0xff]
    %v131 = vld [vmem:[#allocation2 + $0x288] sm:$0xff]
    %v132 = vld [vmem:[#allocation2 + $0x290] sm:$0xff]
    %v133 = vld [vmem:[#allocation2 + $0x298] sm:$0xff]
    %v134 = vld [vmem:[#allocation2 + $0x2a0] sm:$0xff]
    %v135 = vld [vmem:[#allocation2 + $0x2a8] sm:$0xff]
    %v136 = vld [vmem:[#allocation2 + $0x2b0] sm:$0xff]
    %v137 = vld [vmem:[#allocation2 + $0x2b8] sm:$0xff]
    %v138 = vld [vmem:[#allocation2 + $0x2c0] sm:$0xff]
    %v139 = vld [vmem:[#allocation2 + $0x2c8] sm:$0xff]
    %v140 = vld [vmem:[#allocation2 + $0x2d0] sm:$0xff]
    %v141 = vld [vmem:[#allocation2 + $0x2d8] sm:$0xff]
    %v142 = vld [vmem:[#allocation2 + $0x2e0] sm:$0xff]
    %v143 = vld [vmem:[#allocation2 + $0x2e8] sm:$0xff]
    %v144 = vld [vmem:[#allocation2 + $0x2f0] sm:$0xff]
    %v145 = vld [vmem:[#allocation2 + $0x2f8] sm:$0xff]
    %v146 = vld [vmem:[#allocation2 + $0x300] sm:$0xff]
    %v147 = vld [vmem:[#allocation2 + $0x308] sm:$0xff]
    %v148 = vld [vmem:[#allocation2 + $0x310] sm:$0xff]
    %v149 = vld [vmem:[#allocation2 + $0x318] sm:$0xff]
    %v150 = vld [vmem:[#allocation2 + $0x320] sm:$0xff]
    %v151 = vld [vmem:[#allocation2 + $0x328] sm:$0xff]
    %v152 = vld [vmem:[#allocation2 + $0x330] sm:$0xff]
    %v153 = vld [vmem:[#allocation2 + $0x338] sm:$0xff]
    %v154 = vld [vmem:[#allocation2 + $0x340] sm:$0xff]
    %v155 = vld [vmem:[#allocation2 + $0x348] sm:$0xff]
    %v156 = vld [vmem:[#allocation2 + $0x350] sm:$0xff]
    %v157 = vld [vmem:[#allocation2 + $0x358] sm:$0xff]
    %v158 = vld [vmem:[#allocation2 + $0x360] sm:$0xff]
    %v159 = vld [vmem:[#allocation2 + $0x368] sm:$0xff]
    %v160 = vld [vmem:[#allocation2 + $0x370] sm:$0xff]
    %v161 = vld [vmem:[#allocation2 + $0x378] sm:$0xff]
    %v162 = vld [vmem:[#allocation2 + $0x380] sm:$0xff]
    %v163 = vld [vmem:[#allocation2 + $0x388] sm:$0xff]
    %v164 = vld [vmem:[#allocation2 + $0x390] sm:$0xff]
    %v165 = vld [vmem:[#allocation2 + $0x398] sm:$0xff]
    %v166 = vld [vmem:[#allocation2 + $0x3a0] sm:$0xff]
    %v167 = vld [vmem:[#allocation2 + $0x3a8] sm:$0xff]
    %v168 = vld [vmem:[#allocation2 + $0x3b0] sm:$0xff]
    %v169 = vld [vmem:[#allocation2 + $0x3b8] sm:$0xff]
    %v170 = vld [vmem:[#allocation2 + $0x3c0] sm:$0xff]
    %v171 = vld [vmem:[#allocation2 + $0x3c8] sm:$0xff]
    %v172 = vld [vmem:[#allocation2 + $0x3d0] sm:$0xff]
    %v173 = vld [vmem:[#allocation2 + $0x3d8] sm:$0xff]
    %v174 = vld [vmem:[#allocation2 + $0x3e0] sm:$0xff]
    %v175 = vld [vmem:[#allocation2 + $0x3e8] sm:$0xff]
    %v176 = vld [vmem:[#allocation2 + $0x3f0] sm:$0xff]
    %v177 = vld [vmem:[#allocation2 + $0x3f8] sm:$0xff]
    %v178 = vld [vmem:[%s3] sm:$0xf]
    %v180 = vperm.slane %v178, 0
    %v181 = vperm.slane %v178, 1
    %v182 = vperm.slane %v178, 2
    %v183 = vperm.slane %v178, 3
    %189 = vst [vmem:[#allocation1] ss:$4 sm:$0xff] %v49
    %v190 = vld.sshfl [vmem:[#allocation1] sm:$0xff pattern:$0x73625140]
    %v191 = vld.sshfl [vmem:[#allocation1 + $0x8] sm:$0xff pattern:$0x73625140]
    %194 = vmatpush.msra.mxu0 %v110
    %195 = vmatpush.msra.mxu0 %v106
    %196 = vmatpush.msra.mxu0 %v102
    %197 = vmatpush.msra.mxu0 %v98
    %198 = vmatpush.msra.mxu0 %v94
    %199 = vmatpush.msra.mxu0 %v90
    %200 = vmatpush.msra.mxu0 %v86
    %201 = vmatpush.msra.mxu0 %v82
    %202 = vmatpush.msra.mxu0 %v78
    %203 = vmatpush.msra.mxu0 %v74
    %204 = vmatpush.msra.mxu0 %v70
    %205 = vmatpush.msra.mxu0 %v66
    %206 = vmatpush.msra.mxu0 %v62
    %207 = vmatpush.msra.mxu0 %v58
    %208 = vmatpush.msra.mxu0 %v54
    %209 = vmatpush.msra.mxu0 %v50
    %210 = vmatmul.f32.gmra.mxu0 %v190
    %v211 = vpop.f32.mrf.mxu0
    %v212 = vadd.f32 %v180, %v211
    %213 = vdwg.mxu0
    %214 = vmatpush.msra.mxu0 %v174
    %215 = vmatpush.msra.mxu0 %v170
    %216 = vmatpush.msra.mxu0 %v166
    %217 = vmatpush.msra.mxu0 %v162
    %218 = vmatpush.msra.mxu0 %v158
    %219 = vmatpush.msra.mxu0 %v154
    %220 = vmatpush.msra.mxu0 %v150
    %221 = vmatpush.msra.mxu0 %v146
    %222 = vmatpush.msra.mxu0 %v142
    %223 = vmatpush.msra.mxu0 %v138
    %224 = vmatpush.msra.mxu0 %v134
    %225 = vmatpush.msra.mxu0 %v130
    %226 = vmatpush.msra.mxu0 %v126
    %227 = vmatpush.msra.mxu0 %v122
    %228 = vmatpush.msra.mxu0 %v118
    %229 = vmatpush.msra.mxu0 %v114
    %230 = vmatmul.f32.gmra.mxu0 %v191
    %v231 = vpop.f32.mrf.mxu0
    %v232 = vadd.f32 %v212, %v231
    %233 = vdwg.mxu0
    %234 = vmatpush.msra.mxu0 %v111
    %235 = vmatpush.msra.mxu0 %v107
    %236 = vmatpush.msra.mxu0 %v103
    %237 = vmatpush.msra.mxu0 %v99
    %238 = vmatpush.msra.mxu0 %v95
    %239 = vmatpush.msra.mxu0 %v91
    %240 = vmatpush.msra.mxu0 %v87
    %241 = vmatpush.msra.mxu0 %v83
    %242 = vmatpush.msra.mxu0 %v79
    %243 = vmatpush.msra.mxu0 %v75
    %244 = vmatpush.msra.mxu0 %v71
    %245 = vmatpush.msra.mxu0 %v67
    %246 = vmatpush.msra.mxu0 %v63
    %247 = vmatpush.msra.mxu0 %v59
    %248 = vmatpush.msra.mxu0 %v55
    %249 = vmatpush.msra.mxu0 %v51
    %250 = vmatmul.f32.gmra.mxu0 %v190
    %v251 = vpop.f32.mrf.mxu0
    %v252 = vadd.f32 %v181, %v251
    %253 = vdwg.mxu0
    %254 = vmatpush.msra.mxu0 %v175
    %255 = vmatpush.msra.mxu0 %v171
    %256 = vmatpush.msra.mxu0 %v167
    %257 = vmatpush.msra.mxu0 %v163
    %258 = vmatpush.msra.mxu0 %v159
    %259 = vmatpush.msra.mxu0 %v155
    %260 = vmatpush.msra.mxu0 %v151
    %261 = vmatpush.msra.mxu0 %v147
    %262 = vmatpush.msra.mxu0 %v143
    %263 = vmatpush.msra.mxu0 %v139
    %264 = vmatpush.msra.mxu0 %v135
    %265 = vmatpush.msra.mxu0 %v131
    %266 = vmatpush.msra.mxu0 %v127
    %267 = vmatpush.msra.mxu0 %v123
    %268 = vmatpush.msra.mxu0 %v119
    %269 = vmatpush.msra.mxu0 %v115
    %270 = vmatmul.f32.gmra.mxu0 %v191
    %v271 = vpop.f32.mrf.mxu0
    %v272 = vadd.f32 %v252, %v271
    %273 = vdwg.mxu0
    %274 = vmatpush.msra.mxu0 %v112
    %275 = vmatpush.msra.mxu0 %v108
    %276 = vmatpush.msra.mxu0 %v104
    %277 = vmatpush.msra.mxu0 %v100
    %278 = vmatpush.msra.mxu0 %v96
    %279 = vmatpush.msra.mxu0 %v92
    %280 = vmatpush.msra.mxu0 %v88
    %281 = vmatpush.msra.mxu0 %v84
    %282 = vmatpush.msra.mxu0 %v80
    %283 = vmatpush.msra.mxu0 %v76
    %284 = vmatpush.msra.mxu0 %v72
    %285 = vmatpush.msra.mxu0 %v68
    %286 = vmatpush.msra.mxu0 %v64
    %287 = vmatpush.msra.mxu0 %v60
    %288 = vmatpush.msra.mxu0 %v56
    %289 = vmatpush.msra.mxu0 %v52
    %290 = vmatmul.f32.gmra.mxu0 %v190
    %v291 = vpop.f32.mrf.mxu0
    %v292 = vadd.f32 %v182, %v291
    %293 = vdwg.mxu0
    %294 = vmatpush.msra.mxu0 %v176
    %295 = vmatpush.msra.mxu0 %v172
    %296 = vmatpush.msra.mxu0 %v168
    %297 = vmatpush.msra.mxu0 %v164
    %298 = vmatpush.msra.mxu0 %v160
    %299 = vmatpush.msra.mxu0 %v156
    %300 = vmatpush.msra.mxu0 %v152
    %301 = vmatpush.msra.mxu0 %v148
    %302 = vmatpush.msra.mxu0 %v144
    %303 = vmatpush.msra.mxu0 %v140
    %304 = vmatpush.msra.mxu0 %v136
    %305 = vmatpush.msra.mxu0 %v132
    %306 = vmatpush.msra.mxu0 %v128
    %307 = vmatpush.msra.mxu0 %v124
    %308 = vmatpush.msra.mxu0 %v120
    %309 = vmatpush.msra.mxu0 %v116
    %310 = vmatmul.f32.gmra.mxu0 %v191
    %v311 = vpop.f32.mrf.mxu0
    %v312 = vadd.f32 %v292, %v311
    %313 = vdwg.mxu0
    %314 = vmatpush.msra.mxu0 %v113
    %315 = vmatpush.msra.mxu0 %v109
    %316 = vmatpush.msra.mxu0 %v105
    %317 = vmatpush.msra.mxu0 %v101
    %318 = vmatpush.msra.mxu0 %v97
    %319 = vmatpush.msra.mxu0 %v93
    %320 = vmatpush.msra.mxu0 %v89
    %321 = vmatpush.msra.mxu0 %v85
    %322 = vmatpush.msra.mxu0 %v81
    %323 = vmatpush.msra.mxu0 %v77
    %324 = vmatpush.msra.mxu0 %v73
    %325 = vmatpush.msra.mxu0 %v69
    %326 = vmatpush.msra.mxu0 %v65
    %327 = vmatpush.msra.mxu0 %v61
    %328 = vmatpush.msra.mxu0 %v57
    %329 = vmatpush.msra.mxu0 %v53
    %330 = vmatmul.f32.gmra.mxu0 %v190
    %v331 = vpop.f32.mrf.mxu0
    %v332 = vadd.f32 %v183, %v331
    %333 = vdwg.mxu0
    %334 = vmatpush.msra.mxu0 %v177
    %335 = vmatpush.msra.mxu0 %v173
    %336 = vmatpush.msra.mxu0 %v169
    %337 = vmatpush.msra.mxu0 %v165
    %338 = vmatpush.msra.mxu0 %v161
    %339 = vmatpush.msra.mxu0 %v157
    %340 = vmatpush.msra.mxu0 %v153
    %341 = vmatpush.msra.mxu0 %v149
    %342 = vmatpush.msra.mxu0 %v145
    %343 = vmatpush.msra.mxu0 %v141
    %344 = vmatpush.msra.mxu0 %v137
    %345 = vmatpush.msra.mxu0 %v133
    %346 = vmatpush.msra.mxu0 %v129
    %347 = vmatpush.msra.mxu0 %v125
    %348 = vmatpush.msra.mxu0 %v121
    %349 = vmatpush.msra.mxu0 %v117
    %350 = vmatmul.f32.gmra.mxu0 %v191
    %v351 = vpop.f32.mrf.mxu0
    %v352 = vadd.f32 %v332, %v351
    %353 = vdwg.mxu0
    %v354 = vmax.f32 %v232, 0.0
    %v355 = vmax.f32 %v272, 0.0
    %v356 = vmax.f32 %v312, 0.0
    %v357 = vmax.f32 %v352, 0.0
    %v358 = vld [vmem:[%s4] sm:$0xff]
    %v359 = vld [vmem:[%s4 + $0x8] sm:$0xff]
    %v360 = vld [vmem:[%s4 + $0x10] sm:$0xff]
    %v361 = vld [vmem:[%s4 + $0x18] sm:$0xff]
    %v362 = vld [vmem:[%s4 + $0x20] sm:$0xff]
    %v363 = vld [vmem:[%s4 + $0x28] sm:$0xff]
    %v364 = vld [vmem:[%s4 + $0x30] sm:$0xff]
    %v365 = vld [vmem:[%s4 + $0x38] sm:$0xff]
    %v366 = vld [vmem:[%s4 + $0x40] sm:$0xff]
    %v367 = vld [vmem:[%s4 + $0x48] sm:$0xff]
    %v368 = vld [vmem:[%s4 + $0x50] sm:$0xff]
    %v369 = vld [vmem:[%s4 + $0x58] sm:$0xff]
    %v370 = vld [vmem:[%s4 + $0x60] sm:$0xff]
    %v371 = vld [vmem:[%s4 + $0x68] sm:$0xff]
    %v372 = vld [vmem:[%s4 + $0x70] sm:$0xff]
    %v373 = vld [vmem:[%s4 + $0x78] sm:$0xff]
    %v374 = vld [vmem:[%s4 + $0x80] sm:$0xff]
    %v375 = vld [vmem:[%s4 + $0x88] sm:$0xff]
    %v376 = vld [vmem:[%s4 + $0x90] sm:$0xff]
    %v377 = vld [vmem:[%s4 + $0x98] sm:$0xff]
    %v378 = vld [vmem:[%s4 + $0xa0] sm:$0xff]
    %v379 = vld [vmem:[%s4 + $0xa8] sm:$0xff]
    %v380 = vld [vmem:[%s4 + $0xb0] sm:$0xff]
    %v381 = vld [vmem:[%s4 + $0xb8] sm:$0xff]
    %v382 = vld [vmem:[%s4 + $0xc0] sm:$0xff]
    %v383 = vld [vmem:[%s4 + $0xc8] sm:$0xff]
    %v384 = vld [vmem:[%s4 + $0xd0] sm:$0xff]
    %v385 = vld [vmem:[%s4 + $0xd8] sm:$0xff]
    %v386 = vld [vmem:[%s4 + $0xe0] sm:$0xff]
    %v387 = vld [vmem:[%s4 + $0xe8] sm:$0xff]
    %v388 = vld [vmem:[%s4 + $0xf0] sm:$0xff]
    %v389 = vld [vmem:[%s4 + $0xf8] sm:$0xff]
    %v390 = vld [vmem:[%s4 + $0x100] sm:$0xff]
    %v391 = vld [vmem:[%s4 + $0x108] sm:$0xff]
    %v392 = vld [vmem:[%s4 + $0x110] sm:$0xff]
    %v393 = vld [vmem:[%s4 + $0x118] sm:$0xff]
    %v394 = vld [vmem:[%s4 + $0x120] sm:$0xff]
    %v395 = vld [vmem:[%s4 + $0x128] sm:$0xff]
    %v396 = vld [vmem:[%s4 + $0x130] sm:$0xff]
    %v397 = vld [vmem:[%s4 + $0x138] sm:$0xff]
    %v398 = vld [vmem:[%s4 + $0x140] sm:$0xff]
    %v399 = vld [vmem:[%s4 + $0x148] sm:$0xff]
    %v400 = vld [vmem:[%s4 + $0x150] sm:$0xff]
    %v401 = vld [vmem:[%s4 + $0x158] sm:$0xff]
    %v402 = vld [vmem:[%s4 + $0x160] sm:$0xff]
    %v403 = vld [vmem:[%s4 + $0x168] sm:$0xff]
    %v404 = vld [vmem:[%s4 + $0x170] sm:$0xff]
    %v405 = vld [vmem:[%s4 + $0x178] sm:$0xff]
    %v406 = vld [vmem:[%s4 + $0x180] sm:$0xff]
    %v407 = vld [vmem:[%s4 + $0x188] sm:$0xff]
    %v408 = vld [vmem:[%s4 + $0x190] sm:$0xff]
    %v409 = vld [vmem:[%s4 + $0x198] sm:$0xff]
    %v410 = vld [vmem:[%s4 + $0x1a0] sm:$0xff]
    %v411 = vld [vmem:[%s4 + $0x1a8] sm:$0xff]
    %v412 = vld [vmem:[%s4 + $0x1b0] sm:$0xff]
    %v413 = vld [vmem:[%s4 + $0x1b8] sm:$0xff]
    %v414 = vld [vmem:[%s4 + $0x1c0] sm:$0xff]
    %v415 = vld [vmem:[%s4 + $0x1c8] sm:$0xff]
    %v416 = vld [vmem:[%s4 + $0x1d0] sm:$0xff]
    %v417 = vld [vmem:[%s4 + $0x1d8] sm:$0xff]
    %v418 = vld [vmem:[%s4 + $0x1e0] sm:$0xff]
    %v419 = vld [vmem:[%s4 + $0x1e8] sm:$0xff]
    %v420 = vld [vmem:[%s4 + $0x1f0] sm:$0xff]
    %v421 = vld [vmem:[%s4 + $0x1f8] sm:$0xff]
    %v422 = vld [vmem:[%s1] sm:$0x3]
    %v423 = vld [vmem:[%s5] sm:$0xf]
    %vm424 = vcmask 31744
    %v426 = vsel %vm424, %v422, 0
    %vm428 = vcmask 1043456
    %v430 = vsel %vm428, %v423, 0
    %432 = vmatpush.msra.mxu0 0.0
    %433 = vmatpush.msra.mxu0 0.0
    %434 = vmatpush.msra.mxu0 0.0
    %435 = vmatpush.msra.mxu0 0.0
    %436 = vmatpush.msra.mxu0 0.0
    %437 = vmatpush.msra.mxu0 0.0
    %438 = vmatpush.msra.mxu0 0.0
    %439 = vmatpush.msra.mxu0 0.0
    %440 = vmatpush.msra.mxu0 0.0
    %441 = vmatpush.msra.mxu0 0.0
    %442 = vmatpush.msra.mxu0 0.0
    %443 = vmatpush.msra.mxu0 0.0
    %444 = vmatpush.msra.mxu0 0.0
    %445 = vmatpush.msra.mxu0 0.0
    %446 = vmatpush.msra.mxu0 0.0
    %447 = vmatpush.msra.mxu0 %v430
    %448 = vmatmul.f32.gmra.mxu0 %v426
    %v449 = vpop.f32.mrf.mxu0
    %v450 = vadd.f32 0.0, %v449
    %451 = vdwg.mxu0
    %452 = vmatpush.msra.mxu0 %v373
    %453 = vmatpush.msra.mxu0 %v372
    %454 = vmatpush.msra.mxu0 %v371
    %455 = vmatpush.msra.mxu0 %v370
    %456 = vmatpush.msra.mxu0 %v369
    %457 = vmatpush.msra.mxu0 %v368
    %458 = vmatpush.msra.mxu0 %v367
    %459 = vmatpush.msra.mxu0 %v366
    %460 = vmatpush.msra.mxu0 %v365
    %461 = vmatpush.msra.mxu0 %v364
    %462 = vmatpush.msra.mxu0 %v363
    %463 = vmatpush.msra.mxu0 %v362
    %464 = vmatpush.msra.mxu0 %v361
    %465 = vmatpush.msra.mxu0 %v360
    %466 = vmatpush.msra.mxu0 %v359
    %467 = vmatpush.msra.mxu0 %v358
    %468 = vmatmul.f32.gmra.mxu0 %v354
    %v469 = vpop.f32.mrf.mxu0
    %v470 = vadd.f32 %v450, %v469
    %471 = vdwg.mxu0
    %472 = vmatpush.msra.mxu0 %v389
    %473 = vmatpush.msra.mxu0 %v388
    %474 = vmatpush.msra.mxu0 %v387
    %475 = vmatpush.msra.mxu0 %v386
    %476 = vmatpush.msra.mxu0 %v385
    %477 = vmatpush.msra.mxu0 %v384
    %478 = vmatpush.msra.mxu0 %v383
    %479 = vmatpush.msra.mxu0 %v382
    %480 = vmatpush.msra.mxu0 %v381
    %481 = vmatpush.msra.mxu0 %v380
    %482 = vmatpush.msra.mxu0 %v379
    %483 = vmatpush.msra.mxu0 %v378
    %484 = vmatpush.msra.mxu0 %v377
    %485 = vmatpush.msra.mxu0 %v376
    %486 = vmatpush.msra.mxu0 %v375
    %487 = vmatpush.msra.mxu0 %v374
    %488 = vmatmul.f32.gmra.mxu0 %v355
    %v489 = vpop.f32.mrf.mxu0
    %v490 = vadd.f32 %v470, %v489
    %491 = vdwg.mxu0
    %492 = vmatpush.msra.mxu0 %v405
    %493 = vmatpush.msra.mxu0 %v404
    %494 = vmatpush.msra.mxu0 %v403
    %495 = vmatpush.msra.mxu0 %v402
    %496 = vmatpush.msra.mxu0 %v401
    %497 = vmatpush.msra.mxu0 %v400
    %498 = vmatpush.msra.mxu0 %v399
    %499 = vmatpush.msra.mxu0 %v398
    %500 = vmatpush.msra.mxu0 %v397
    %501 = vmatpush.msra.mxu0 %v396
    %502 = vmatpush.msra.mxu0 %v395
    %503 = vmatpush.msra.mxu0 %v394
    %504 = vmatpush.msra.mxu0 %v393
    %505 = vmatpush.msra.mxu0 %v392
    %506 = vmatpush.msra.mxu0 %v391
    %507 = vmatpush.msra.mxu0 %v390
    %508 = vmatmul.f32.gmra.mxu0 %v356
    %v509 = vpop.f32.mrf.mxu0
    %v510 = vadd.f32 %v490, %v509
    %511 = vdwg.mxu0
    %512 = vmatpush.msra.mxu0 %v421
    %513 = vmatpush.msra.mxu0 %v420
    %514 = vmatpush.msra.mxu0 %v419
    %515 = vmatpush.msra.mxu0 %v418
    %516 = vmatpush.msra.mxu0 %v417
    %517 = vmatpush.msra.mxu0 %v416
    %518 = vmatpush.msra.mxu0 %v415
    %519 = vmatpush.msra.mxu0 %v414
    %520 = vmatpush.msra.mxu0 %v413
    %521 = vmatpush.msra.mxu0 %v412
    %522 = vmatpush.msra.mxu0 %v411
    %523 = vmatpush.msra.mxu0 %v410
    %524 = vmatpush.msra.mxu0 %v409
    %525 = vmatpush.msra.mxu0 %v408
    %526 = vmatpush.msra.mxu0 %v407
    %527 = vmatpush.msra.mxu0 %v406
    %528 = vmatmul.f32.gmra.mxu0 %v357
    %v529 = vpop.f32.mrf.mxu0
    %v530 = vadd.f32 %v510, %v529
    %531 = vdwg.mxu0
    %v532 = vld [vmem:[%s6] sm:$0x1]
    %v534 = vperm.slane %v532, 0
    %v536 = vadd.f32 %v530, %v534
    %v537 = vmax.f32 %v536, 0.0
    %v538 = vld [vmem:[%s7] sm:$0xff]
    %v539 = vld [vmem:[%s7 + $0x8] sm:$0xff]
    %v540 = vld [vmem:[%s7 + $0x10] sm:$0xff]
    %v541 = vld [vmem:[%s7 + $0x18] sm:$0xff]
    %v542 = vld [vmem:[%s7 + $0x20] sm:$0xff]
    %v543 = vld [vmem:[%s7 + $0x28] sm:$0xff]
    %v544 = vld [vmem:[%s7 + $0x30] sm:$0xff]
    %v545 = vld [vmem:[%s7 + $0x38] sm:$0xff]
    %v546 = vld [vmem:[%s8] sm:$0x1]
    %v548 = vperm.slane %v546, 0
    %vm550 = vcmask 523264
    %v552 = vsel %vm550, %v537, 0
    %554 = vmatpush.msra.mxu0 0.0
    %555 = vmatpush.msra.mxu0 0.0
    %556 = vmatpush.msra.mxu0 0.0
    %557 = vmatpush.msra.mxu0 0.0
    %558 = vmatpush.msra.mxu0 0.0
    %559 = vmatpush.msra.mxu0 0.0
    %560 = vmatpush.msra.mxu0 0.0
    %561 = vmatpush.msra.mxu0 0.0
    %562 = vmatpush.msra.mxu0 %v545
    %563 = vmatpush.msra.mxu0 %v544
    %564 = vmatpush.msra.mxu0 %v543
    %565 = vmatpush.msra.mxu0 %v542
    %566 = vmatpush.msra.mxu0 %v541
    %567 = vmatpush.msra.mxu0 %v540
    %568 = vmatpush.msra.mxu0 %v539
    %569 = vmatpush.msra.mxu0 %v538
    %570 = vmatmul.f32.gmra.mxu0 %v552
    %v571 = vpop.f32.mrf.mxu0
    %v572 = vadd.f32 %v548, %v571
    %573 = vdwg.mxu0
    %vm574 = vcmask 58368
    %575 = vst.msk [vmem:[#allocation5] sm:$0x3] %vm574, %v572
    // Predicated region
    $region42: #{tpu_custom_call.1} parent=1 // pred_check
      _
    $region43: #{tpu_custom_call.1} parent=1 // pred_check_branch
      %577 = sbr.rel (0) target = $region45
    $region44: #{tpu_custom_call.1} parent=1 // pred_region
      %579 = vsyncadd [#allocation4], 0
      %s581 = sshll.u32 [#allocation5], 4
      %s582 = int_to_ptr.vmem [resolvable:$true] %s581
      %s583 = sshll.u32 %s9, 4
      %s584 = int_to_ptr.hbm [resolvable:$true] %s583
      %586 = dma.vmem_to_hbm [thread:$0]  %s582, 32, %s584, [#allocation4]
    $region45: #{tpu_custom_call.1} parent=1 // pred_fallthru
      _
    // Predicated region
    $region46: #{tpu_custom_call.1} parent=1 // pred_check
      _
    $region47: #{tpu_custom_call.1} parent=1 // pred_check_branch
      %588 = sbr.rel (0) target = $region49
    $region48: #{tpu_custom_call.1} parent=1 // pred_region
      %590 = dma.done [#allocation4], 32
    $region49: #{tpu_custom_call.1} parent=1 // pred_fallthru
      _
    %591 = vsyncpa [#allocation3], 1
    %592 = vsyncpa [#allocation4], 1

</llo_original>
